<compile_context>
chip_gen: v7x
topology: tpu7x:2x2x1
jax: 0.10.0
libtpu: 0.0.40
codegen_flags: <defaults>
</compile_context>

<pallas_src>
import math

import jax
import jax.numpy as jnp
from jax import lax
from jax.experimental import pallas as pl
from jax.experimental.pallas import tpu as pltpu


def _attention_kernel(xq_ref, xkv_ref, wq_ref, bq_ref, wkv_ref, bkv_ref, o_ref):
    # xq_ref : (TN, D)  bf16  -- query rows for this grid step
    # xkv_ref: (N,  D)  bf16  -- full sequence rows (for K / V projections)
    # wq_ref : (D, D)   bf16  -- Wq^T (pre-transposed in the wrapper)
    # bq_ref : (1, D)   f32
    # wkv_ref: (D, 2D)  bf16  -- [Wk^T | Wv^T] fused
    # bkv_ref: (1, 2D)  f32   -- [bk | bv]
    # o_ref  : (TN, D)  f32
    d = wq_ref.shape[0]
    scale = 1.0 / math.sqrt(float(d))

    # Projections on the MXU: bf16 operands, f32 accumulate, f32 bias add.
    q = jnp.dot(xq_ref[...], wq_ref[...],
                preferred_element_type=jnp.float32) + bq_ref[...]
    kv = jnp.dot(xkv_ref[...], wkv_ref[...],
                 preferred_element_type=jnp.float32) + bkv_ref[...]

    # Fold 1/sqrt(d) into q in f32, then drop operands to bf16 for the MXU.
    qb = (q * scale).astype(jnp.bfloat16)
    kb = kv[:, :d].astype(jnp.bfloat16)
    vb = kv[:, d:].astype(jnp.bfloat16)

    n_kv = kb.shape[0]
    if n_kv <= d:
        # Conventional order: (q @ k^T) @ v — the NxN intermediate is small.
        attn = lax.dot_general(qb, kb, (((1,), (1,)), ((), ())),
                               preferred_element_type=jnp.float32)
        out = jnp.dot(attn.astype(jnp.bfloat16), vb,
                      preferred_element_type=jnp.float32)
    else:
        # No softmax -> associativity: q @ (k^T @ v). Avoids the NxN
        # intermediate entirely (DxD instead) and cuts FLOPs to 2*N*D^2.
        ktv = lax.dot_general(kb, vb, (((0,), (0,)), ((), ())),
                              preferred_element_type=jnp.float32)
        out = jnp.dot(qb, ktv.astype(jnp.bfloat16),
                      preferred_element_type=jnp.float32)

    o_ref[...] = out.astype(o_ref.dtype)


def attention_pallas(x, wq, bq, wk, bk, wv, bv, *, q_tile=None):
    """x: (B, N, D); weights in nn.Linear (out, in) layout; biases (D,)."""
    B, N, D = x.shape
    out_dtype = x.dtype
    mxu_dtype = jnp.bfloat16

    # Hoist the weight transposes out of the kernel and fuse K/V projections.
    wq_t = wq.T.astype(mxu_dtype)                                    # (D, D)
    wkv_t = jnp.concatenate([wk.T, wv.T], axis=1).astype(mxu_dtype)  # (D, 2D)
    bq2 = bq.reshape(1, D).astype(jnp.float32)
    bkv = jnp.concatenate([bk, bv]).reshape(1, 2 * D).astype(jnp.float32)
    xm = x.astype(mxu_dtype)

    # Query-row tile: keep large-N cases within v7x's 64 MiB VMEM; a single
    # tile for small N (demo).
    if q_tile is None:
        q_tile = N
        if N > 512:
            for cand in (512, 256, 128, 64, 32, 16, 8):
                if N % cand == 0:
                    q_tile = cand
                    break
    assert N % q_tile == 0, "q_tile must divide N"
    n_q_tiles = N // q_tile

    # Advisory cost estimate so XLA schedules the surrounding graph sensibly.
    flops = 2 * B * N * D * (3 * D) + 4 * B * N * D * min(N, D)
    bytes_accessed = (
        2 * xm.size * xm.dtype.itemsize            # x read as q-tiles + kv rows
        + (wq_t.size + wkv_t.size) * 2             # bf16 weights
        + (bq2.size + bkv.size) * 4                # f32 biases
        + B * N * D * jnp.dtype(out_dtype).itemsize)
    cost = pl.CostEstimate(flops=flops, transcendentals=0,
                           bytes_accessed=bytes_accessed)

    return pl.pallas_call(
        _attention_kernel,
        out_shape=jax.ShapeDtypeStruct((B, N, D), out_dtype),
        grid_spec=pltpu.PrefetchScalarGridSpec(
            num_scalar_prefetch=0,
            grid=(B, n_q_tiles),
            in_specs=[
                pl.BlockSpec((None, q_tile, D), lambda b, i: (b, i, 0)),  # x (q rows)
                pl.BlockSpec((None, N, D), lambda b, i: (b, 0, 0)),       # x (kv rows)
                pl.BlockSpec((D, D), lambda b, i: (0, 0)),                # Wq^T
                pl.BlockSpec((1, D), lambda b, i: (0, 0)),                # bq
                pl.BlockSpec((D, 2 * D), lambda b, i: (0, 0)),            # [Wk^T|Wv^T]
                pl.BlockSpec((1, 2 * D), lambda b, i: (0, 0)),            # [bk|bv]
            ],
            out_specs=pl.BlockSpec((None, q_tile, D), lambda b, i: (b, i, 0)),
        ),
        compiler_params=pltpu.CompilerParams(
            dimension_semantics=("parallel", "parallel"),
            vmem_limit_bytes=48 * 1024 * 1024),
        cost_estimate=cost,
    )(xm, xm, wq_t, bq2, wkv_t, bkv)


def attention_ref(x, wq, bq, wk, bk, wv, bv):
    q = x @ wq.T + bq
    k = x @ wk.T + bk
    v = x @ wv.T + bv
    attn = jnp.einsum("bnd,bmd->bnm", q, k) / math.sqrt(q.shape[-1])
    return jnp.einsum("bnm,bmd->bnd", attn, v)


if __name__ == "__main__":
    B, N, D = 2, 8, 32   # batch=2, seq=8, dim=32

    key = jax.random.PRNGKey(0)
    kx, kq, kbq, kk, kbk, kv_, kbv = jax.random.split(key, 7)

    x = jax.random.normal(kx, (B, N, D), dtype=jnp.float32)

    # Deterministic nn.Linear-style init (uniform in +-1/sqrt(in_features)).
    bound = 1.0 / math.sqrt(D)
    wq = jax.random.uniform(kq, (D, D), jnp.float32, -bound, bound)
    bq = jax.random.uniform(kbq, (D,), jnp.float32, -bound, bound)
    wk = jax.random.uniform(kk, (D, D), jnp.float32, -bound, bound)
    bk = jax.random.uniform(kbk, (D,), jnp.float32, -bound, bound)
    wv = jax.random.uniform(kv_, (D, D), jnp.float32, -bound, bound)
    bv = jax.random.uniform(kbv, (D,), jnp.float32, -bound, bound)

    out = attention_pallas(x, wq, bq, wk, bk, wv, bv)
    out = jax.block_until_ready(out)

    ref = attention_ref(x, wq, bq, wk, bk, wv, bv)
    assert out.shape == (B, N, D)
    # bf16 MXU operands with f32 accumulation -> relaxed tolerance vs f32 ref.
    assert jnp.allclose(out, ref, atol=5e-2, rtol=5e-2), "mismatch vs reference"

    print("KERNEL_OK")
</pallas_src>

<mosaic_0001>
module attributes {stable_mosaic.version = 11 : i64} {
  func.func @_attention_kernel(%arg0: i32, %arg1: i32, %arg2: memref<1x8x32xbf16, #tpu.memory_space<vmem>>, %arg3: memref<1x8x32xbf16, #tpu.memory_space<vmem>>, %arg4: memref<32x32xbf16, #tpu.memory_space<vmem>>, %arg5: memref<1x32xf32, #tpu.memory_space<vmem>>, %arg6: memref<32x64xbf16, #tpu.memory_space<vmem>>, %arg7: memref<1x64xf32, #tpu.memory_space<vmem>>, %arg8: memref<1x8x32xf32, #tpu.memory_space<vmem>>) attributes {dimension_semantics = [#tpu.dimension_semantics<parallel>, #tpu.dimension_semantics<parallel>], iteration_bounds = array<i64: 2, 1>, scalar_prefetch = 0 : i64, scratch_operands = 0 : i64, tpu.core_type = #tpu.core_type<tc>, window_params = [{transform_indices = @transform_0, window_bounds = array<i64: 1, 8, 32>}, {transform_indices = @transform_1, window_bounds = array<i64: 1, 8, 32>}, {pipeline_mode = #tpu.pipeline_mode<synchronous>, transform_indices = @transform_2, window_bounds = array<i64: 32, 32>}, {pipeline_mode = #tpu.pipeline_mode<synchronous>, transform_indices = @transform_3, window_bounds = array<i64: 1, 32>}, {pipeline_mode = #tpu.pipeline_mode<synchronous>, transform_indices = @transform_4, window_bounds = array<i64: 32, 64>}, {pipeline_mode = #tpu.pipeline_mode<synchronous>, transform_indices = @transform_5, window_bounds = array<i64: 1, 64>}, {transform_indices = @transform_6, window_bounds = array<i64: 1, 8, 32>}]} {
    %c0 = arith.constant 0 : index
    %c0_0 = arith.constant 0 : index
    %c0_1 = arith.constant 0 : index
    %0 = vector.load %arg2[%c0, %c0_0, %c0_1] : memref<1x8x32xbf16, #tpu.memory_space<vmem>>, vector<1x8x32xbf16>
    %1 = vector.shape_cast %0 : vector<1x8x32xbf16> to vector<8x32xbf16>
    %c0_2 = arith.constant 0 : index
    %c0_3 = arith.constant 0 : index
    %2 = vector.load %arg4[%c0_2, %c0_3] : memref<32x32xbf16, #tpu.memory_space<vmem>>, vector<32x32xbf16>
    %cst = arith.constant dense<0.000000e+00> : vector<8x32xf32>
    %3 = tpu.matmul %1, %2, %cst {dimension_numbers = #tpu.dot_dimension_numbers<[1], [0], [0], [1], [0, 0, 1, 1], [], []>} : vector<8x32xbf16>, vector<32x32xbf16>, vector<8x32xf32> -> vector<8x32xf32>
    %c0_4 = arith.constant 0 : index
    %c0_5 = arith.constant 0 : index
    %4 = vector.load %arg5[%c0_4, %c0_5] : memref<1x32xf32, #tpu.memory_space<vmem>>, vector<1x32xf32>
    %5 = vector.broadcast %4 : vector<1x32xf32> to vector<8x32xf32>
    %6 = arith.addf %3, %5 : vector<8x32xf32>
    %c0_6 = arith.constant 0 : index
    %c0_7 = arith.constant 0 : index
    %c0_8 = arith.constant 0 : index
    %7 = vector.load %arg3[%c0_6, %c0_7, %c0_8] : memref<1x8x32xbf16, #tpu.memory_space<vmem>>, vector<1x8x32xbf16>
    %8 = vector.shape_cast %7 : vector<1x8x32xbf16> to vector<8x32xbf16>
    %c0_9 = arith.constant 0 : index
    %c0_10 = arith.constant 0 : index
    %9 = vector.load %arg6[%c0_9, %c0_10] : memref<32x64xbf16, #tpu.memory_space<vmem>>, vector<32x64xbf16>
    %cst_11 = arith.constant dense<0.000000e+00> : vector<8x64xf32>
    %10 = tpu.matmul %8, %9, %cst_11 {dimension_numbers = #tpu.dot_dimension_numbers<[1], [0], [0], [1], [0, 0, 1, 1], [], []>} : vector<8x32xbf16>, vector<32x64xbf16>, vector<8x64xf32> -> vector<8x64xf32>
    %c0_12 = arith.constant 0 : index
    %c0_13 = arith.constant 0 : index
    %11 = vector.load %arg7[%c0_12, %c0_13] : memref<1x64xf32, #tpu.memory_space<vmem>>, vector<1x64xf32>
    %12 = vector.broadcast %11 : vector<1x64xf32> to vector<8x64xf32>
    %13 = arith.addf %10, %12 : vector<8x64xf32>
    %cst_14 = arith.constant 0.176776692 : f32
    %14 = vector.broadcast %cst_14 : f32 to vector<8x32xf32>
    %15 = arith.mulf %6, %14 : vector<8x32xf32>
    %16 = arith.truncf %15 : vector<8x32xf32> to vector<8x32xbf16>
    %17 = vector.extract_strided_slice %13 {offsets = [0, 0], sizes = [8, 32], strides = [1, 1]} : vector<8x64xf32> to vector<8x32xf32>
    %18 = arith.truncf %17 : vector<8x32xf32> to vector<8x32xbf16>
    %19 = vector.extract_strided_slice %13 {offsets = [0, 32], sizes = [8, 32], strides = [1, 1]} : vector<8x64xf32> to vector<8x32xf32>
    %20 = arith.truncf %19 : vector<8x32xf32> to vector<8x32xbf16>
    %cst_15 = arith.constant dense<0.000000e+00> : vector<8x8xf32>
    %21 = tpu.matmul %16, %18, %cst_15 {dimension_numbers = #tpu.dot_dimension_numbers<[1], [1], [0], [0], [0, 0, 1, 0], [], []>} : vector<8x32xbf16>, vector<8x32xbf16>, vector<8x8xf32> -> vector<8x8xf32>
    %22 = arith.truncf %21 : vector<8x8xf32> to vector<8x8xbf16>
    %cst_16 = arith.constant dense<0.000000e+00> : vector<8x32xf32>
    %23 = tpu.matmul %22, %20, %cst_16 {dimension_numbers = #tpu.dot_dimension_numbers<[1], [0], [0], [1], [0, 0, 1, 1], [], []>} : vector<8x8xbf16>, vector<8x32xbf16>, vector<8x32xf32> -> vector<8x32xf32>
    %c0_17 = arith.constant 0 : index
    %c0_18 = arith.constant 0 : index
    %c0_19 = arith.constant 0 : index
    %24 = vector.load %arg8[%c0_17, %c0_18, %c0_19] : memref<1x8x32xf32, #tpu.memory_space<vmem>>, vector<1x8x32xf32>
    %25 = vector.shape_cast %24 : vector<1x8x32xf32> to vector<8x32xf32>
    %26 = vector.shape_cast %23 : vector<8x32xf32> to vector<1x8x32xf32>
    tpu.vector_store %arg8[%c0_17, %c0_18, %c0_19], %26 {strides = array<i32>} : memref<1x8x32xf32, #tpu.memory_space<vmem>>, vector<1x8x32xf32>,
    return
  }
  func.func @transform_0(%arg0: i32, %arg1: i32) -> (i32, i32, i32) {
    %c0_i32 = arith.constant 0 : i32
    %c0_i32_0 = arith.constant 0 : i32
    return %arg0, %arg1, %c0_i32 : i32, i32, i32
  }
  func.func @transform_1(%arg0: i32, %arg1: i32) -> (i32, i32, i32) {
    %c0_i32 = arith.constant 0 : i32
    %c0_i32_0 = arith.constant 0 : i32
    %c0_i32_1 = arith.constant 0 : i32
    return %arg0, %c0_i32, %c0_i32_0 : i32, i32, i32
  }
  func.func @transform_2(%arg0: i32, %arg1: i32) -> (i32, i32) {
    %c0_i32 = arith.constant 0 : i32
    %c0_i32_0 = arith.constant 0 : i32
    %c0_i32_1 = arith.constant 0 : i32
    return %c0_i32, %c0_i32_0 : i32, i32
  }
  func.func @transform_3(%arg0: i32, %arg1: i32) -> (i32, i32) {
    %c0_i32 = arith.constant 0 : i32
    %c0_i32_0 = arith.constant 0 : i32
    %c0_i32_1 = arith.constant 0 : i32
    return %c0_i32, %c0_i32_0 : i32, i32
  }
  func.func @transform_4(%arg0: i32, %arg1: i32) -> (i32, i32) {
    %c0_i32 = arith.constant 0 : i32
    %c0_i32_0 = arith.constant 0 : i32
    %c0_i32_1 = arith.constant 0 : i32
    return %c0_i32, %c0_i32_0 : i32, i32
  }
  func.func @transform_5(%arg0: i32, %arg1: i32) -> (i32, i32) {
    %c0_i32 = arith.constant 0 : i32
    %c0_i32_0 = arith.constant 0 : i32
    %c0_i32_1 = arith.constant 0 : i32
    return %c0_i32, %c0_i32_0 : i32, i32
  }
  func.func @transform_6(%arg0: i32, %arg1: i32) -> (i32, i32, i32) {
    %c0_i32 = arith.constant 0 : i32
    %c0_i32_0 = arith.constant 0 : i32
    return %arg0, %arg1, %c0_i32 : i32, i32, i32
  }
}

</mosaic_0001>

<llo_original>
// kernel: tpu_custom_call.1
$region0: #{tpu_custom_call.1}
  #allocation0 [shape = 'u32[]', space=smem, size = 0x4, offset = 0x4, fixed_abs, tag = 'smem constant byte address 0x4 - core index']
  #allocation1 [shape = 'u32[144,128]{1,0:T(1,128)}', space=vmem, size = 0x12000, scoped, tag = 'internal scratch']
  %s0 = inlined_call_operand.hbm [shape: bf16[2,8,32], index: 0, kind: input, shape index: {}]
  %s1 = inlined_call_operand.hbm [shape: bf16[2,8,32], index: 1, kind: input, shape index: {}]
  %s2 = inlined_call_operand.hbm [shape: bf16[32,32], index: 2, kind: input, shape index: {}]
  %s3 = inlined_call_operand.vmem [shape: f32[1,32], index: 3, kind: input, shape index: {}]
  %s4 = inlined_call_operand.hbm [shape: bf16[32,64], index: 4, kind: input, shape index: {}]
  %s5 = inlined_call_operand.vmem [shape: f32[1,64], index: 5, kind: input, shape index: {}]
  %s6 = inlined_call_operand.hbm [shape: f32[2,8,32], index: 6, kind: output, shape index: {}]
  %s7 = sld [smem:[#allocation0]]
  $region73: #{tpu_custom_call.1} parent=0
    _
  %s9 = ssub.s32 1, %s7
  %s10 = scalar_select 0, %s9, %s7
  $region1: #{tpu_custom_call.1} parent=0
    #allocation2 [shape = 'u8[4096]{0}', space=vmem, size = 0x1000, scoped, tag = 'input window, operand 0']
    #allocation3 [shape = 's32[2]{0}', space=sflag, size = 0x8, scoped, tag = 'scoped memory for tpu_custom_call.1']
    #allocation4 [shape = 's32[2]{0}', space=sflag, size = 0x8, scoped, tag = 'scoped memory for tpu_custom_call.1']
    #allocation5 [shape = 'u8[4096]{0}', space=vmem, size = 0x1000, scoped, tag = 'input window, operand 1']
    #allocation6 [shape = 's32[2]{0}', space=sflag, size = 0x8, scoped, tag = 'scoped memory for tpu_custom_call.1']
    #allocation7 [shape = 'u8[8192]{0}', space=vmem, size = 0x2000, scoped, tag = 'input window, operand 2, single buffered']
    #allocation8 [shape = 'u8[8192]{0}', space=vmem, size = 0x2000, scoped, tag = 'input window, operand 4, single buffered']
    #allocation9 [shape = 's32[1]{0}', space=sflag, size = 0x4, scoped, tag = 'scoped memory for tpu_custom_call.1']
    #allocation10 [shape = 'u8[8192]{0}', space=vmem, size = 0x2000, scoped, tag = 'output window, operand 0']
    %11 = vsyncpa [#allocation3], 0
    %s12 = scalar_lea.sflag [#allocation3], 1
    %13 = vsyncpa %s12, 0
    %14 = vsyncpa [#allocation6], 0
    %s15 = scalar_lea.sflag [#allocation6], 1
    %16 = vsyncpa %s15, 0
    %17 = vsyncpa [#allocation9], 0
    %18 = vsyncpa [#allocation4], 0
    %s19 = scalar_lea.sflag [#allocation4], 1
    %20 = vsyncpa %s19, 0
    loop: start=0, step=1, limit=4
    $region2: #{tpu_custom_call.1} parent=1 // loop_pre_header
      _
    $region3: #{tpu_custom_call.1} parent=1 // loop_header
      %s22 = sphi 0, %s26
      %p23 = scmp.ge.s32.totalorder %s22, 4
      %s29 = sphi 0, %s41
      %s30 = sphi 0, %s37
      %s31 = sphi 0, %s29
      %s32 = sphi 0, %s30
      %s33 = sphi 0, %s31
      %s34 = sphi 0, %s32
      %s46 = sphi 0, %s48
      %s49 = sphi 0, %s46
      %s50 = sphi 0, %s49
      %s66 = sphi 0, %s50
      %s72 = sphi 0, %s74
      %s75 = sphi 0, %s72
      %s76 = sphi 0, %s75
      %s92 = sphi 0, %s76
      %s96 = sphi 0, %s96
      %s98 = sphi 0, %s96
      %s99 = sphi 0, %s98
      %s113 = sphi 0, %s99
      %s117 = sphi 0, %s117
      %s119 = sphi 0, %s117
      %s120 = sphi 0, %s119
      %s134 = sphi 0, %s120
      %s138 = sphi 0, %s138
      %s140 = sphi 0, %s138
      %s141 = sphi 0, %s140
      %s155 = sphi 0, %s141
      %s159 = sphi 0, %s159
      %s161 = sphi 0, %s159
      %s162 = sphi 0, %s161
      %s176 = sphi 0, %s162
      %s184 = sphi 0, %s186
      %s187 = sphi 0, %s184
      %s188 = sphi 0, %s187
      %s204 = sphi 0, %s188
    $region4: #{tpu_custom_call.1} parent=1 // loop_header_branch
      %25 = sbr.rel (%p23) target = $region8
    $region5: #{tpu_custom_call.1} parent=1 // loop_body
      %s27 = ssub.s32 %s22, 1
      %s28 = ssub.s32 %s22, 2
      %s35 = sadd.s32 1, %s30
      %p36 = scmp.ge.s32.totalorder %s35, 1
      %s37 = scalar_select %p36, 0, %s35
      %s38 = sadd.s32 1, %s29
      %s39 = scalar_select %p36, %s38, %s29
      %p40 = scmp.ge.s32.totalorder %s39, 2
      %s41 = scalar_select %p40, 0, %s39
      %s42 = ssub.s32 %s29, %s41
      %s43 = ssub.s32 %s30, %s37
      %s44 = sor.u32 %s42, %s43
      %p45 = scmp.eq.s32.totalorder %s44, 0
      %s47 = sadd.s32 %s46, 1
      %s48 = scalar_select %p45, %s46, %s47
      %p51 = pneg %p45
      %p52 = scmp.eq.s32.totalorder %s22, 1
      %p53 = por %p51, %p52
      %p54 = scmp.ne.s32.totalorder %s46, %s49
      %p55 = scmp.eq.s32.totalorder %s22, 0
      %p56 = por %p54, %p55
      %p57 = scmp.ne.s32.totalorder %s46, %s49
      %p58 = scmp.eq.s32.totalorder %s27, 1
      %p59 = por %p57, %p58
      %p60 = scmp.ne.s32.totalorder %s49, %s50
      %p61 = scmp.eq.s32.totalorder %s27, 0
      %p62 = por %p60, %p61
      %p63 = scmp.ne.s32.totalorder %s49, %s50
      %p64 = scmp.eq.s32.totalorder %s28, 1
      %p65 = por %p63, %p64
      %p67 = scmp.ne.s32.totalorder %s50, %s66
      %p68 = scmp.eq.s32.totalorder %s28, 0
      %p69 = por %p67, %p68
      %s70 = ssub.s32 %s29, %s41
      %p71 = scmp.eq.s32.totalorder %s70, 0
      %s73 = sadd.s32 %s72, 1
      %s74 = scalar_select %p71, %s72, %s73
      %p77 = pneg %p71
      %p78 = scmp.eq.s32.totalorder %s22, 1
      %p79 = por %p77, %p78
      %p80 = scmp.ne.s32.totalorder %s72, %s75
      %p81 = scmp.eq.s32.totalorder %s22, 0
      %p82 = por %p80, %p81
      %p83 = scmp.ne.s32.totalorder %s72, %s75
      %p84 = scmp.eq.s32.totalorder %s27, 1
      %p85 = por %p83, %p84
      %p86 = scmp.ne.s32.totalorder %s75, %s76
      %p87 = scmp.eq.s32.totalorder %s27, 0
      %p88 = por %p86, %p87
      %p89 = scmp.ne.s32.totalorder %s75, %s76
      %p90 = scmp.eq.s32.totalorder %s28, 1
      %p91 = por %p89, %p90
      %p93 = scmp.ne.s32.totalorder %s76, %s92
      %p94 = scmp.eq.s32.totalorder %s28, 0
      %p95 = por %p93, %p94
      %s97 = sadd.s32 %s96, 1
      %p100 = scmp.eq.s32.totalorder %s22, 1
      %p101 = scmp.ne.s32.totalorder %s96, %s98
      %p102 = scmp.eq.s32.totalorder %s22, 0
      %p103 = por %p101, %p102
      %p104 = scmp.ne.s32.totalorder %s96, %s98
      %p105 = scmp.eq.s32.totalorder %s27, 1
      %p106 = por %p104, %p105
      %p107 = scmp.ne.s32.totalorder %s98, %s99
      %p108 = scmp.eq.s32.totalorder %s27, 0
      %p109 = por %p107, %p108
      %p110 = scmp.ne.s32.totalorder %s98, %s99
      %p111 = scmp.eq.s32.totalorder %s28, 1
      %p112 = por %p110, %p111
      %p114 = scmp.ne.s32.totalorder %s99, %s113
      %p115 = scmp.eq.s32.totalorder %s28, 0
      %p116 = por %p114, %p115
      %s118 = sadd.s32 %s117, 1
      %p121 = scmp.eq.s32.totalorder %s22, 1
      %p122 = scmp.ne.s32.totalorder %s117, %s119
      %p123 = scmp.eq.s32.totalorder %s22, 0
      %p124 = por %p122, %p123
      %p125 = scmp.ne.s32.totalorder %s117, %s119
      %p126 = scmp.eq.s32.totalorder %s27, 1
      %p127 = por %p125, %p126
      %p128 = scmp.ne.s32.totalorder %s119, %s120
      %p129 = scmp.eq.s32.totalorder %s27, 0
      %p130 = por %p128, %p129
      %p131 = scmp.ne.s32.totalorder %s119, %s120
      %p132 = scmp.eq.s32.totalorder %s28, 1
      %p133 = por %p131, %p132
      %p135 = scmp.ne.s32.totalorder %s120, %s134
      %p136 = scmp.eq.s32.totalorder %s28, 0
      %p137 = por %p135, %p136
      %s139 = sadd.s32 %s138, 1
      %p142 = scmp.eq.s32.totalorder %s22, 1
      %p143 = scmp.ne.s32.totalorder %s138, %s140
      %p144 = scmp.eq.s32.totalorder %s22, 0
      %p145 = por %p143, %p144
      %p146 = scmp.ne.s32.totalorder %s138, %s140
      %p147 = scmp.eq.s32.totalorder %s27, 1
      %p148 = por %p146, %p147
      %p149 = scmp.ne.s32.totalorder %s140, %s141
      %p150 = scmp.eq.s32.totalorder %s27, 0
      %p151 = por %p149, %p150
      %p152 = scmp.ne.s32.totalorder %s140, %s141
      %p153 = scmp.eq.s32.totalorder %s28, 1
      %p154 = por %p152, %p153
      %p156 = scmp.ne.s32.totalorder %s141, %s155
      %p157 = scmp.eq.s32.totalorder %s28, 0
      %p158 = por %p156, %p157
      %s160 = sadd.s32 %s159, 1
      %p163 = scmp.eq.s32.totalorder %s22, 1
      %p164 = scmp.ne.s32.totalorder %s159, %s161
      %p165 = scmp.eq.s32.totalorder %s22, 0
      %p166 = por %p164, %p165
      %p167 = scmp.ne.s32.totalorder %s159, %s161
      %p168 = scmp.eq.s32.totalorder %s27, 1
      %p169 = por %p167, %p168
      %p170 = scmp.ne.s32.totalorder %s161, %s162
      %p171 = scmp.eq.s32.totalorder %s27, 0
      %p172 = por %p170, %p171
      %p173 = scmp.ne.s32.totalorder %s161, %s162
      %p174 = scmp.eq.s32.totalorder %s28, 1
      %p175 = por %p173, %p174
      %p177 = scmp.ne.s32.totalorder %s162, %s176
      %p178 = scmp.eq.s32.totalorder %s28, 0
      %p179 = por %p177, %p178
      %s180 = ssub.s32 %s29, %s41
      %s181 = ssub.s32 %s30, %s37
      %s182 = sor.u32 %s180, %s181
      %p183 = scmp.eq.s32.totalorder %s182, 0
      %s185 = sadd.s32 %s184, 1
      %s186 = scalar_select %p183, %s184, %s185
      %p189 = pneg %p183
      %p190 = scmp.eq.s32.totalorder %s22, 1
      %p191 = por %p189, %p190
      %p192 = scmp.ne.s32.totalorder %s184, %s187
      %p193 = scmp.eq.s32.totalorder %s22, 0
      %p194 = por %p192, %p193
      %p195 = scmp.ne.s32.totalorder %s184, %s187
      %p196 = scmp.eq.s32.totalorder %s27, 1
      %p197 = por %p195, %p196
      %p198 = scmp.ne.s32.totalorder %s187, %s188
      %p199 = scmp.eq.s32.totalorder %s27, 0
      %p200 = por %p198, %p199
      %p201 = scmp.ne.s32.totalorder %s187, %s188
      %p202 = scmp.eq.s32.totalorder %s28, 1
      %p203 = por %p201, %p202
      %p205 = scmp.ne.s32.totalorder %s188, %s204
      %p206 = scmp.eq.s32.totalorder %s28, 0
      %p207 = por %p205, %p206
      %p208 = scmp.le.s32.totalorder 1, %s22
      %p209 = scmp.lt.s32.totalorder %s22, 3
      %p210 = pnand %p208, %p209
      %p211 = pneg %p210
      // Predicated region
      $region9: #{tpu_custom_call.1} parent=5 // pred_check
        _
      $region10: #{tpu_custom_call.1} parent=5 // pred_check_branch
        %213 = sbr.rel (%p210) target = $region12
      $region11: #{tpu_custom_call.1} parent=5 // pred_region
        %s214 = ssub.s32 %s22, 1
        // Predicated region
        $region13: #{tpu_custom_call.1} parent=11 // pred_check
          %p215 = pneg %p109
        $region14: #{tpu_custom_call.1} parent=11 // pred_check_branch
          %217 = sbr.rel (%p215) target = $region16
        $region15: #{tpu_custom_call.1} parent=11 // pred_region
          %s219 = ssub.s32 256, 256
          %220 = vsyncadd [#allocation6], %s219
          %s221 = sshll.u32 [#allocation7], 4
          %s222 = int_to_ptr.vmem [resolvable:$true] %s221
          %227 = dma.hbm_to_vmem [thread:$0]  %s2, 256, %s222, [#allocation6], 64, 64, 4
        $region16: #{tpu_custom_call.1} parent=11 // pred_fallthru
          _
        // Predicated region
        $region17: #{tpu_custom_call.1} parent=11 // pred_check
          %p228 = pneg %p130
        $region18: #{tpu_custom_call.1} parent=11 // pred_check_branch
          %230 = sbr.rel (%p228) target = $region20
        $region19: #{tpu_custom_call.1} parent=11 // pred_region
          _
        $region20: #{tpu_custom_call.1} parent=11 // pred_fallthru
          _
        // Predicated region
        $region21: #{tpu_custom_call.1} parent=11 // pred_check
          %p231 = pneg %p151
        $region22: #{tpu_custom_call.1} parent=11 // pred_check_branch
          %233 = sbr.rel (%p231) target = $region24
        $region23: #{tpu_custom_call.1} parent=11 // pred_region
          %s235 = ssub.s32 256, 256
          %236 = vsyncadd [#allocation9], %s235
          %s237 = sshll.u32 [#allocation8], 4
          %s238 = int_to_ptr.vmem [resolvable:$true] %s237
          %243 = dma.hbm_to_vmem [thread:$0]  %s4, 256, %s238, [#allocation9], 64, 64, 4
        $region24: #{tpu_custom_call.1} parent=11 // pred_fallthru
          _
        // Predicated region
        $region25: #{tpu_custom_call.1} parent=11 // pred_check
          %p244 = pneg %p172
        $region26: #{tpu_custom_call.1} parent=11 // pred_check_branch
          %246 = sbr.rel (%p244) target = $region28
        $region27: #{tpu_custom_call.1} parent=11 // pred_region
          _
        $region28: #{tpu_custom_call.1} parent=11 // pred_fallthru
          _
      $region12: #{tpu_custom_call.1} parent=5 // pred_fallthru
        _
      %p247 = scmp.lt.s32.totalorder %s22, 2
      // Predicated region
      $region29: #{tpu_custom_call.1} parent=5 // pred_check
        %p248 = pneg %p247
      $region30: #{tpu_custom_call.1} parent=5 // pred_check_branch
        %250 = sbr.rel (%p248) target = $region32
      $region31: #{tpu_custom_call.1} parent=5 // pred_region
        // Predicated region
        $region33: #{tpu_custom_call.1} parent=31 // pred_check
          %p251 = pneg %p56
        $region34: #{tpu_custom_call.1} parent=31 // pred_check_branch
          %253 = sbr.rel (%p251) target = $region36
        $region35: #{tpu_custom_call.1} parent=31 // pred_region
          %s254 = sand.u32 %s46, 1
          %s255 = scalar_lea.sflag [#allocation3], %s254
          %s256 = sand.u32 %s46, 1
          %s257 = smul.addr %s256, 4
          %s258 = scalar_lea.vmem [#allocation2], %s257
          %s260 = ssub.s32 64, 64
          %261 = vsyncadd %s255, %s260
          %s262 = sadd.s32 %s30, %s29
          %s263 = smul.addr %s262, 64
          %s264 = scalar_lea.hbm %s0, %s263
          %s266 = sshll.u32 %s258, 4
          %s267 = int_to_ptr.vmem [resolvable:$true] %s266
          %269 = dma.hbm_to_vmem [thread:$0]  %s264, 64, %s267, %s255
        $region36: #{tpu_custom_call.1} parent=31 // pred_fallthru
          _
        // Predicated region
        $region37: #{tpu_custom_call.1} parent=31 // pred_check
          %p270 = pneg %p82
        $region38: #{tpu_custom_call.1} parent=31 // pred_check_branch
          %272 = sbr.rel (%p270) target = $region40
        $region39: #{tpu_custom_call.1} parent=31 // pred_region
          %s273 = sand.u32 %s22, 1
          %s274 = scalar_lea.sflag [#allocation6], %s273
          %s275 = sand.u32 %s72, 1
          %s276 = smul.addr %s275, 4
          %s277 = scalar_lea.vmem [#allocation5], %s276
          %s279 = ssub.s32 64, 64
          %280 = vsyncadd %s274, %s279
          %s281 = smul.addr %s29, 64
          %s282 = scalar_lea.hbm %s1, %s281
          %s284 = sshll.u32 %s277, 4
          %s285 = int_to_ptr.vmem [resolvable:$true] %s284
          %287 = dma.hbm_to_vmem [thread:$0]  %s282, 64, %s285, %s274
        $region40: #{tpu_custom_call.1} parent=31 // pred_fallthru
          _
      $region32: #{tpu_custom_call.1} parent=5 // pred_fallthru
        _
      %p288 = scmp.le.s32.totalorder 1, %s22
      %p289 = scmp.lt.s32.totalorder %s22, 3
      %p290 = pnand %p288, %p289
      %p291 = pneg %p290
      // Predicated region
      $region41: #{tpu_custom_call.1} parent=5 // pred_check
        _
      $region42: #{tpu_custom_call.1} parent=5 // pred_check_branch
        %293 = sbr.rel (%p290) target = $region44
      $region43: #{tpu_custom_call.1} parent=5 // pred_region
        %s294 = ssub.s32 %s22, 1
        %s295 = sand.u32 %s49, 1
        %s296 = scalar_lea.sflag [#allocation3], %s295
        %s297 = sand.u32 %s49, 1
        %s298 = smul.addr %s297, 4
        %s299 = scalar_lea.vmem [#allocation2], %s298
        // Predicated region
        $region45: #{tpu_custom_call.1} parent=43 // pred_check
          %p300 = pneg %p62
        $region46: #{tpu_custom_call.1} parent=43 // pred_check_branch
          %302 = sbr.rel (%p300) target = $region48
        $region47: #{tpu_custom_call.1} parent=43 // pred_region
          %303 = dma.done %s296, 64
        $region48: #{tpu_custom_call.1} parent=43 // pred_fallthru
          _
        %s304 = sand.u32 %s27, 1
        %s305 = scalar_lea.sflag [#allocation6], %s304
        %s306 = sand.u32 %s75, 1
        %s307 = smul.addr %s306, 4
        %s308 = scalar_lea.vmem [#allocation5], %s307
        // Predicated region
        $region49: #{tpu_custom_call.1} parent=43 // pred_check
          %p309 = pneg %p88
        $region50: #{tpu_custom_call.1} parent=43 // pred_check_branch
          %311 = sbr.rel (%p309) target = $region52
        $region51: #{tpu_custom_call.1} parent=43 // pred_region
          %312 = dma.done %s305, 64
        $region52: #{tpu_custom_call.1} parent=43 // pred_fallthru
          _
        // Predicated region
        $region53: #{tpu_custom_call.1} parent=43 // pred_check
          %p313 = pneg %p109
        $region54: #{tpu_custom_call.1} parent=43 // pred_check_branch
          %315 = sbr.rel (%p313) target = $region56
        $region55: #{tpu_custom_call.1} parent=43 // pred_region
          %316 = dma.done [#allocation6], 256
        $region56: #{tpu_custom_call.1} parent=43 // pred_fallthru
          _
        // Predicated region
        $region57: #{tpu_custom_call.1} parent=43 // pred_check
          %p317 = pneg %p151
        $region58: #{tpu_custom_call.1} parent=43 // pred_check_branch
          %319 = sbr.rel (%p317) target = $region60
        $region59: #{tpu_custom_call.1} parent=43 // pred_region
          %320 = dma.done [#allocation9], 256
        $region60: #{tpu_custom_call.1} parent=43 // pred_fallthru
          _
        %s321 = sand.u32 %s49, 1
        %s322 = scalar_lea.sflag [#allocation3], %s321
        %s323 = sand.u32 %s49, 1
        %s324 = smul.addr %s323, 4
        %s325 = scalar_lea.vmem [#allocation2], %s324
        %p326 = pneg %p62
        %p327 = pneg %p59
        %s328 = sand.u32 %s27, 1
        %s329 = scalar_lea.sflag [#allocation6], %s328
        %s330 = sand.u32 %s75, 1
        %s331 = smul.addr %s330, 4
        %s332 = scalar_lea.vmem [#allocation5], %s331
        %p333 = pneg %p88
        %p334 = pneg %p85
        %p335 = pneg %p109
        %p336 = pneg %p106
        %p337 = pneg %p130
        %p338 = pneg %p127
        %p339 = pneg %p151
        %p340 = pneg %p148
        %p341 = pneg %p172
        %p342 = pneg %p169
        %p343 = pneg %p200
        %p344 = pneg %p197
        %s345 = sand.u32 %s187, 1
        %s346 = scalar_lea.sflag [#allocation4], %s345
        %s347 = sand.u32 %s187, 1
        %s348 = smul.addr %s347, 8
        %s349 = scalar_lea.vmem [#allocation10], %s348
        %v351 = vld [vmem:[%s299] sm:$0xf]
        %v352 = vld [vmem:[#allocation7] sm:$0xf]
        %v353 = vld [vmem:[#allocation7 + $0x4] sm:$0xf]
        %v354 = vld [vmem:[#allocation7 + $0x8] sm:$0xf]
        %v355 = vld [vmem:[#allocation7 + $0xc] sm:$0xf]
        %v356 = vld [vmem:[%s3] sm:$0x1]
        %v358 = vlaneseq
        %v359 = vshrl.u32 %v358, 7
        %v360 = vsub.s32 0, %v359
        %v361 = vrot.slane %v356, %v360
        %v367 = vunpack.c.l.b16 %v352
        %v368 = vunpack.c.l.b16 %v353
        %v369 = vunpack.c.l.b16 %v354
        %v370 = vunpack.c.l.b16 %v355
        %v371 = vpack.c.b16 %v368, %v367
        %v372 = vpack.c.b16 %v370, %v369
        %vm375 = vcmask 261120
        %v377 = vsel %vm375, %v351, 0
        %379 = vmatprep.subr.bf16.mxu0 0
        %380 = vmatpush1.bf16.msra.mxu0 %v371
        %381 = vmatprep.subr.bf16.mxu0 0
        %382 = vmatpush1.bf16.msra.mxu0 %v372
        %383 = vmatprep.subr.bf16.mxu0 0
        %384 = vmatpush1.bf16.msra.mxu0 0
        %385 = vmatprep.subr.bf16.mxu0 0
        %386 = vmatpush1.bf16.msra.mxu0 0
        %387 = vmatprep.subr.bf16.mxu0 0
        %388 = vmatpush1.bf16.msra.mxu0 0
        %389 = vmatprep.subr.bf16.mxu0 0
        %390 = vmatpush1.bf16.msra.mxu0 0
        %391 = vmatprep.subr.bf16.mxu0 0
        %392 = vmatpush1.bf16.msra.mxu0 0
        %393 = vmatprep.subr.bf16.mxu0 0
        %394 = vmatpush1.bf16.msra.mxu0 0
        %395 = vmatprep.subr.bf16.mxu0 0
        %396 = vmatpush1.bf16.msra.mxu0 0
        %397 = vmatprep.subr.bf16.mxu0 0
        %398 = vmatpush1.bf16.msra.mxu0 0
        %399 = vmatprep.subr.bf16.mxu0 0
        %400 = vmatpush1.bf16.msra.mxu0 0
        %401 = vmatprep.subr.bf16.mxu0 0
        %402 = vmatpush1.bf16.msra.mxu0 0
        %403 = vmatprep.subr.bf16.mxu0 0
        %404 = vmatpush1.bf16.msra.mxu0 0
        %405 = vmatprep.subr.bf16.mxu0 0
        %406 = vmatpush1.bf16.msra.mxu0 0
        %407 = vmatprep.subr.bf16.mxu0 0
        %408 = vmatpush1.bf16.msra.mxu0 0
        %409 = vmatprep.subr.bf16.mxu0 0
        %410 = vmatpush1.bf16.msra.mxu0 0
        %411 = vmatprep.mubr.bf16.mxu0 0
        %412 = vmatmul.mubr.bf16.gmra.mrb[0].mxu0 %v377
        %v413 = vpop.f32.mrb[0].mxu0
        %v414 = vadd.f32 %v361, %v413
        %v415 = vpop.f32.mrb[0].mxu0
        %v416 = vpop.f32.mrb[0].mxu0
        %v417 = vpop.f32.mrb[0].mxu0
        %418 = vdwg.mxu0
        %v419 = vld [vmem:[%s308] sm:$0xf]
        %v420 = vld [vmem:[#allocation8] sm:$0xf]
        %v421 = vld [vmem:[#allocation8 + $0x4] sm:$0xf]
        %v422 = vld [vmem:[#allocation8 + $0x8] sm:$0xf]
        %v423 = vld [vmem:[#allocation8 + $0xc] sm:$0xf]
        %v424 = vld [vmem:[%s5] sm:$0x1]
        %v426 = vlaneseq
        %v427 = vshrl.u32 %v426, 7
        %v428 = vsub.s32 0, %v427
        %v429 = vrot.slane %v424, %v428
        %v435 = vunpack.c.l.b16 %v420
        %v436 = vunpack.c.l.b16 %v421
        %v437 = vunpack.c.l.b16 %v422
        %v438 = vunpack.c.l.b16 %v423
        %v439 = vpack.c.b16 %v436, %v435
        %v440 = vpack.c.b16 %v438, %v437
        %v444 = vsel %vm375, %v419, 0
        %446 = vmatprep.subr.bf16.mxu0 0
        %447 = vmatpush1.bf16.msra.mxu0 %v439
        %448 = vmatprep.subr.bf16.mxu0 0
        %449 = vmatpush1.bf16.msra.mxu0 %v440
        %450 = vmatprep.subr.bf16.mxu0 0
        %451 = vmatpush1.bf16.msra.mxu0 0
        %452 = vmatprep.subr.bf16.mxu0 0
        %453 = vmatpush1.bf16.msra.mxu0 0
        %454 = vmatprep.subr.bf16.mxu0 0
        %455 = vmatpush1.bf16.msra.mxu0 0
        %456 = vmatprep.subr.bf16.mxu0 0
        %457 = vmatpush1.bf16.msra.mxu0 0
        %458 = vmatprep.subr.bf16.mxu0 0
        %459 = vmatpush1.bf16.msra.mxu0 0
        %460 = vmatprep.subr.bf16.mxu0 0
        %461 = vmatpush1.bf16.msra.mxu0 0
        %462 = vmatprep.subr.bf16.mxu0 0
        %463 = vmatpush1.bf16.msra.mxu0 0
        %464 = vmatprep.subr.bf16.mxu0 0
        %465 = vmatpush1.bf16.msra.mxu0 0
        %466 = vmatprep.subr.bf16.mxu0 0
        %467 = vmatpush1.bf16.msra.mxu0 0
        %468 = vmatprep.subr.bf16.mxu0 0
        %469 = vmatpush1.bf16.msra.mxu0 0
        %470 = vmatprep.subr.bf16.mxu0 0
        %471 = vmatpush1.bf16.msra.mxu0 0
        %472 = vmatprep.subr.bf16.mxu0 0
        %473 = vmatpush1.bf16.msra.mxu0 0
        %474 = vmatprep.subr.bf16.mxu0 0
        %475 = vmatpush1.bf16.msra.mxu0 0
        %476 = vmatprep.subr.bf16.mxu0 0
        %477 = vmatpush1.bf16.msra.mxu0 0
        %478 = vmatprep.mubr.bf16.mxu0 0
        %479 = vmatmul.mubr.bf16.gmra.mrb[0].mxu0 %v444
        %v480 = vpop.f32.mrb[0].mxu0
        %v481 = vadd.f32 %v429, %v480
        %v482 = vpop.f32.mrb[0].mxu0
        %v483 = vpop.f32.mrb[0].mxu0
        %v484 = vpop.f32.mrb[0].mxu0
        %485 = vdwg.mxu0
        %v486 = vmul.f32 %v414, 0.17677669
        %v487 = vpack.c.bf16 %v486, %v486
        %v488 = vpack.c.bf16 %v481, %v481
        %v490 = vsel %vm375, %v487, 0
        %v493 = vsel %vm375, %v488, 0
        %495 = vmatprep.subr.bf16.mxu0 0
        %496 = vmatpush1.bf16.xpose.msra.mxu0 %v493
        %497 = vmatprep.subr.bf16.mxu0 0
        %498 = vmatpush1.bf16.xpose.msra.mxu0 0
        %499 = vmatprep.subr.bf16.mxu0 0
        %500 = vmatpush1.bf16.xpose.msra.mxu0 0
        %501 = vmatprep.subr.bf16.mxu0 0
        %502 = vmatpush1.bf16.xpose.msra.mxu0 0
        %503 = vmatprep.subr.bf16.mxu0 0
        %504 = vmatpush1.bf16.xpose.msra.mxu0 0
        %505 = vmatprep.subr.bf16.mxu0 0
        %506 = vmatpush1.bf16.xpose.msra.mxu0 0
        %507 = vmatprep.subr.bf16.mxu0 0
        %508 = vmatpush1.bf16.xpose.msra.mxu0 0
        %509 = vmatprep.subr.bf16.mxu0 0
        %510 = vmatpush1.bf16.xpose.msra.mxu0 0
        %511 = vmatprep.subr.bf16.mxu0 0
        %512 = vmatpush1.bf16.xpose.msra.mxu0 0
        %513 = vmatprep.subr.bf16.mxu0 0
        %514 = vmatpush1.bf16.xpose.msra.mxu0 0
        %515 = vmatprep.subr.bf16.mxu0 0
        %516 = vmatpush1.bf16.xpose.msra.mxu0 0
        %517 = vmatprep.subr.bf16.mxu0 0
        %518 = vmatpush1.bf16.xpose.msra.mxu0 0
        %519 = vmatprep.subr.bf16.mxu0 0
        %520 = vmatpush1.bf16.xpose.msra.mxu0 0
        %521 = vmatprep.subr.bf16.mxu0 0
        %522 = vmatpush1.bf16.xpose.msra.mxu0 0
        %523 = vmatprep.subr.bf16.mxu0 0
        %524 = vmatpush1.bf16.xpose.msra.mxu0 0
        %525 = vmatprep.subr.bf16.mxu0 0
        %526 = vmatpush1.bf16.xpose.msra.mxu0 0
        %527 = vmatprep.mubr.bf16.mxu0 0
        %528 = vmatmul.mubr.bf16.gmra.mrb[0].mxu0 %v490
        %v529 = vpop.f32.mrb[0].mxu0
        %v530 = vadd.f32 0.0, %v529
        %v531 = vpop.f32.mrb[0].mxu0
        %v532 = vpop.f32.mrb[0].mxu0
        %v533 = vpop.f32.mrb[0].mxu0
        %534 = vdwg.mxu0
        %v535 = vpack.c.bf16 %v530, %v530
        %537 = vrot.lane.b32.xlu0 %v488, 96
        %v538 = vpop.permute.xlu0 %537
        %vm539 = vcmask 64512
        %v541 = vsel %vm539, %v535, 0
        %vm543 = vcmask 1043456
        %v545 = vsel %vm543, %v538, 0
        %547 = vmatprep.subr.bf16.mxu0 0
        %548 = vmatpush1.bf16.msra.mxu0 %v545
        %549 = vmatprep.subr.bf16.mxu0 0
        %550 = vmatpush1.bf16.msra.mxu0 0
        %551 = vmatprep.subr.bf16.mxu0 0
        %552 = vmatpush1.bf16.msra.mxu0 0
        %553 = vmatprep.subr.bf16.mxu0 0
        %554 = vmatpush1.bf16.msra.mxu0 0
        %555 = vmatprep.subr.bf16.mxu0 0
        %556 = vmatpush1.bf16.msra.mxu0 0
        %557 = vmatprep.subr.bf16.mxu0 0
        %558 = vmatpush1.bf16.msra.mxu0 0
        %559 = vmatprep.subr.bf16.mxu0 0
        %560 = vmatpush1.bf16.msra.mxu0 0
        %561 = vmatprep.subr.bf16.mxu0 0
        %562 = vmatpush1.bf16.msra.mxu0 0
        %563 = vmatprep.subr.bf16.mxu0 0
        %564 = vmatpush1.bf16.msra.mxu0 0
        %565 = vmatprep.subr.bf16.mxu0 0
        %566 = vmatpush1.bf16.msra.mxu0 0
        %567 = vmatprep.subr.bf16.mxu0 0
        %568 = vmatpush1.bf16.msra.mxu0 0
        %569 = vmatprep.subr.bf16.mxu0 0
        %570 = vmatpush1.bf16.msra.mxu0 0
        %571 = vmatprep.subr.bf16.mxu0 0
        %572 = vmatpush1.bf16.msra.mxu0 0
        %573 = vmatprep.subr.bf16.mxu0 0
        %574 = vmatpush1.bf16.msra.mxu0 0
        %575 = vmatprep.subr.bf16.mxu0 0
        %576 = vmatpush1.bf16.msra.mxu0 0
        %577 = vmatprep.subr.bf16.mxu0 0
        %578 = vmatpush1.bf16.msra.mxu0 0
        %579 = vmatprep.mubr.bf16.mxu0 0
        %580 = vmatmul.mubr.bf16.gmra.mrb[0].mxu0 %v541
        %v581 = vpop.f32.mrb[0].mxu0
        %v582 = vadd.f32 0.0, %v581
        %v583 = vpop.f32.mrb[0].mxu0
        %v584 = vpop.f32.mrb[0].mxu0
        %v585 = vpop.f32.mrb[0].mxu0
        %586 = vdwg.mxu0
        %587 = vst.msk [vmem:[%s349] sm:$0xff] %vm375, %v582
        %s588 = sand.u32 %s187, 1
        %s589 = scalar_lea.sflag [#allocation4], %s588
        %s590 = sand.u32 %s187, 1
        %s591 = smul.addr %s590, 8
        %s592 = scalar_lea.vmem [#allocation10], %s591
        // Predicated region
        $region61: #{tpu_custom_call.1} parent=43 // pred_check
          %p593 = pneg %p197
        $region62: #{tpu_custom_call.1} parent=43 // pred_check_branch
          %595 = sbr.rel (%p593) target = $region64
        $region63: #{tpu_custom_call.1} parent=43 // pred_region
          %s597 = ssub.s32 128, 128
          %598 = vsyncadd %s589, %s597
          %s599 = sadd.s32 %s32, %s31
          %s600 = smul.addr %s599, 128
          %s601 = scalar_lea.hbm %s6, %s600
          %s603 = sshll.u32 %s592, 4
          %s604 = int_to_ptr.vmem [resolvable:$true] %s603
          %606 = dma.vmem_to_hbm [thread:$0]  %s604, 128, %s601, %s589
        $region64: #{tpu_custom_call.1} parent=43 // pred_fallthru
          _
      $region44: #{tpu_custom_call.1} parent=5 // pred_fallthru
        _
      %p607 = scmp.le.s32.totalorder 2, %s22
      // Predicated region
      $region65: #{tpu_custom_call.1} parent=5 // pred_check
        %p608 = pneg %p607
      $region66: #{tpu_custom_call.1} parent=5 // pred_check_branch
        %610 = sbr.rel (%p608) target = $region68
      $region67: #{tpu_custom_call.1} parent=5 // pred_region
        %s611 = ssub.s32 %s22, 2
        // Predicated region
        $region69: #{tpu_custom_call.1} parent=67 // pred_check
          %p612 = pneg %p203
        $region70: #{tpu_custom_call.1} parent=67 // pred_check_branch
          %614 = sbr.rel (%p612) target = $region72
        $region71: #{tpu_custom_call.1} parent=67 // pred_region
          %s615 = sand.u32 %s188, 1
          %s616 = scalar_lea.sflag [#allocation4], %s615
          %s617 = sand.u32 %s188, 1
          %s618 = smul.addr %s617, 8
          %s619 = scalar_lea.vmem [#allocation10], %s618
          %620 = dma.done %s616, 128
        $region72: #{tpu_custom_call.1} parent=67 // pred_fallthru
          _
      $region68: #{tpu_custom_call.1} parent=5 // pred_fallthru
        _
    $region6: #{tpu_custom_call.1} parent=1 // loop_footer
      %s26 = sadd.s32 1, %s22
    $region7: #{tpu_custom_call.1} parent=1 // loop_footer_branch
      %21 = sbr.rel target = $region3
    $region8: #{tpu_custom_call.1} parent=1 // loop_exit
      _
    %621 = vsyncpa [#allocation3], 1
    %s622 = scalar_lea.sflag [#allocation3], 1
    %623 = vsyncpa %s622, 1
    %624 = vsyncpa [#allocation6], 1
    %s625 = scalar_lea.sflag [#allocation6], 1
    %626 = vsyncpa %s625, 1
    %627 = vsyncpa [#allocation9], 1
    %628 = vsyncpa [#allocation4], 1
    %s629 = scalar_lea.sflag [#allocation4], 1
    %630 = vsyncpa %s629, 1

</llo_original>
